<compile_context>
chip_gen: v5e
topology: v5e:2x2
jax: 0.10.0
libtpu: 0.0.40
codegen_flags: <defaults>
</compile_context>

<pallas_src>
import jax
import jax.numpy as jnp
import numpy as np
from jax import lax
from jax.experimental import pallas as pl
from jax.experimental.pallas import tpu as pltpu


def _round_up(x, m):
    return (x + m - 1) // m * m


def make_convnet_kernel(windows, seq_len, embed_dim, n_ch, n_pad, t_pad, s_pad):
    max_w = max(windows)

    def kernel(ids_ref, embed_ref, w_ref, aux_ref, out_ref, emb_scr):
        # ---- fused embedding gather (ids live in SMEM, table in VMEM) ------
        emb_scr[...] = jnp.zeros((s_pad, embed_dim), jnp.float32)  # zero pad rows
        for s in range(seq_len):
            tok = ids_ref[s]
            emb_scr[pl.ds(s, 1), :] = embed_ref[pl.ds(tok, 1), :]

        # ---- all windows' convolutions as shared per-tap matmuls -----------
        acc = jnp.zeros((t_pad, n_pad), jnp.float32)
        for j in range(max_w):
            a = emb_scr[pl.ds(j, t_pad), :]                        # (T, E)
            wj = w_ref[pl.ds(j * embed_dim, embed_dim), :]         # (E, 128)
            acc = acc + jnp.dot(a, wj, preferred_element_type=jnp.float32)

        conv = acc + aux_ref[pl.ds(0, 1), :]                       # conv biases (once)
        act = jnp.maximum(conv, 0.0)                               # ReLU

        # zero-mask rows past each window's valid length (safe post-ReLU)
        row = lax.broadcasted_iota(jnp.int32, (t_pad, n_pad), 0)
        col = lax.broadcasted_iota(jnp.int32, (t_pad, n_pad), 1)
        limit = jnp.zeros((t_pad, n_pad), jnp.int32)
        for i, w in enumerate(windows):
            t_i = seq_len - w + 1
            limit = jnp.where((col >= n_ch * i) & (col < n_ch * (i + 1)), t_i, limit)
        act = jnp.where(row < limit, act, 0.0)

        feat = jnp.max(act, axis=0, keepdims=True)                 # (1, 128) pooled+concat

        # ---- fc1 -> fc2 (F.dropout is identity in eval mode) ---------------
        fc1w = w_ref[pl.ds(max_w * embed_dim, n_pad), :]
        fc2w = w_ref[pl.ds(max_w * embed_dim + n_pad, n_pad), :]
        h = jnp.dot(feat, fc1w, preferred_element_type=jnp.float32) + aux_ref[pl.ds(1, 1), :]
        logits = jnp.dot(h, fc2w, preferred_element_type=jnp.float32) + aux_ref[pl.ds(2, 1), :]

        # stable log_softmax; padded lanes carry a -1e30 bias so exp() -> 0
        m = jnp.max(logits, axis=1, keepdims=True)
        sh = logits - m
        lse = jnp.log(jnp.sum(jnp.exp(sh), axis=1, keepdims=True))
        out_ref[...] = sh - lse                                    # lane-dense (1, 128)

    return kernel


def convnet_forward(token_ids, params, windows):
    windows = tuple(int(w) for w in windows)
    nw = len(windows)
    max_w = max(windows)
    embed = params["embed"].astype(jnp.float32)
    _, E = embed.shape
    S = int(token_ids.shape[0])
    C = int(params["conv0_w"].shape[0])     # out channels per conv (5)
    H1 = int(params["fc1_w"].shape[0])      # fc1 out features (100)
    NOUT = int(params["fc2_w"].shape[0])    # number of classes (4)
    NPAD = 128
    assert C * nw <= NPAD and H1 <= NPAD and NOUT <= NPAD and E % 8 == 0

    t_pad = _round_up(S - min(windows) + 1, 8)       # pooled time rows (padded)
    s_pad = _round_up(max_w - 1 + t_pad, 8)          # padded emb scratch rows

    # Packed weights: [conv tap 0..max_w-1 | fc1 | fc2], each lane-padded to 128.
    W = jnp.zeros((max_w * E + 2 * NPAD, NPAD), jnp.float32)
    for i, w in enumerate(windows):
        cw = params[f"conv{i}_w"].astype(jnp.float32).reshape(C, w, E)   # (5, w, E)
        for j in range(w):
            W = W.at[j * E:(j + 1) * E, C * i:C * (i + 1)].set(cw[:, j, :].T)
    W = W.at[max_w * E:max_w * E + C * nw, 0:H1].set(
        params["fc1_w"].astype(jnp.float32).T)
    W = W.at[max_w * E + NPAD:max_w * E + NPAD + H1, 0:NOUT].set(
        params["fc2_w"].astype(jnp.float32).T)

    # Packed biases: row0 conv, row1 fc1, row2 fc2 (-1e30 in padded logit lanes).
    aux = jnp.zeros((3, NPAD), jnp.float32)
    for i in range(nw):
        aux = aux.at[0, C * i:C * (i + 1)].set(params[f"conv{i}_b"].astype(jnp.float32))
    aux = aux.at[1, 0:H1].set(params["fc1_b"].astype(jnp.float32))
    aux = aux.at[2, :].set(-1e30)
    aux = aux.at[2, 0:NOUT].set(params["fc2_b"].astype(jnp.float32))

    kernel = make_convnet_kernel(windows, S, E, C, NPAD, t_pad, s_pad)
    out = pl.pallas_call(
        kernel,
        out_shape=jax.ShapeDtypeStruct((1, NPAD), jnp.float32),
        in_specs=[
            pl.BlockSpec(memory_space=pltpu.MemorySpace.SMEM),   # token ids
            pl.BlockSpec(memory_space=pltpu.MemorySpace.VMEM),   # embed table
            pl.BlockSpec(memory_space=pltpu.MemorySpace.VMEM),   # packed weights
            pl.BlockSpec(memory_space=pltpu.MemorySpace.VMEM),   # packed biases
        ],
        out_specs=pl.BlockSpec(memory_space=pltpu.MemorySpace.VMEM),
        scratch_shapes=[pltpu.VMEM((s_pad, E), jnp.float32)],
    )(token_ids.astype(jnp.int32), embed, W, aux)
    return out[:, :NOUT]


def convnet_reference(token_ids, params, windows):
    """Pure-JAX reference replicating the torch forward (eval mode)."""
    emb = params["embed"][token_ids]
    S, E = emb.shape
    pooled = []
    for i, w in enumerate(windows):
        cw = params[f"conv{i}_w"].reshape(5, w * E)
        cb = params[f"conv{i}_b"]
        t = S - w + 1
        cols = jnp.concatenate([emb[j:j + t, :] for j in range(w)], axis=1)
        conv = cols @ cw.T + cb
        pooled.append(jnp.max(jnp.maximum(conv, 0.0), axis=0, keepdims=True))
    feat = jnp.concatenate(pooled, axis=1)
    h = feat @ params["fc1_w"].T + params["fc1_b"]
    logits = h @ params["fc2_w"].T + params["fc2_b"]
    return jax.nn.log_softmax(logits, axis=1)


if __name__ == "__main__":
    vocab_size, embed_dim, seq_len = 50, 32, 16
    windows = (2, 3, 4)

    key = jax.random.PRNGKey(0)
    keys = jax.random.split(key, 16)

    params = {
        "embed": jax.random.normal(keys[0], (vocab_size, embed_dim), jnp.float32)
    }
    for i, w in enumerate(windows):
        params[f"conv{i}_w"] = 0.1 * jax.random.normal(
            keys[1 + 2 * i], (5, 1, w, embed_dim), jnp.float32)
        params[f"conv{i}_b"] = 0.1 * jax.random.normal(
            keys[2 + 2 * i], (5,), jnp.float32)
    nfeat = 5 * len(windows)
    params["fc1_w"] = 0.1 * jax.random.normal(keys[10], (100, nfeat), jnp.float32)
    params["fc1_b"] = 0.1 * jax.random.normal(keys[11], (100,), jnp.float32)
    params["fc2_w"] = 0.1 * jax.random.normal(keys[12], (4, 100), jnp.float32)
    params["fc2_b"] = 0.1 * jax.random.normal(keys[13], (4,), jnp.float32)

    token_ids = jax.random.randint(keys[14], (seq_len,), 0, vocab_size)

    out = convnet_forward(token_ids, params, windows)
    out = jax.block_until_ready(out)

    ref = convnet_reference(token_ids, params, windows)
    assert out.shape == (1, 4)
    np.testing.assert_allclose(np.asarray(out), np.asarray(ref), rtol=1e-4, atol=1e-4)
    print("KERNEL_OK")
</pallas_src>

<mosaic_0001>
module attributes {stable_mosaic.version = 11 : i64} {
  func.func @kernel(%arg0: memref<16xi32, #tpu.memory_space<smem>>, %arg1: memref<50x32xf32, #tpu.memory_space<vmem>>, %arg2: memref<384x128xf32, #tpu.memory_space<vmem>>, %arg3: memref<3x128xf32, #tpu.memory_space<vmem>>, %arg4: memref<1x128xf32, #tpu.memory_space<vmem>>, %arg5: memref<24x32xf32, #tpu.memory_space<vmem>>) attributes {dimension_semantics = [], scalar_prefetch = 0 : i64, scratch_operands = 1 : i64, tpu.core_type = #tpu.core_type<tc>} {
    %cst = arith.constant 0.000000e+00 : f32
    %0 = vector.broadcast %cst : f32 to vector<24x32xf32>
    %c0 = arith.constant 0 : index
    %c0_0 = arith.constant 0 : index
    %1 = vector.load %arg5[%c0, %c0_0] : memref<24x32xf32, #tpu.memory_space<vmem>>, vector<24x32xf32>
    tpu.vector_store %arg5[%c0, %c0_0], %0 {strides = array<i32>} : memref<24x32xf32, #tpu.memory_space<vmem>>, vector<24x32xf32>,
    %c0_1 = arith.constant 0 : index
    %2 = memref.load %arg0[%c0_1] : memref<16xi32, #tpu.memory_space<smem>>
    %3 = arith.index_cast %2 : i32 to index
    %c0_2 = arith.constant 0 : index
    %4 = vector.load %arg1[%3, %c0_2] : memref<50x32xf32, #tpu.memory_space<vmem>>, vector<1x32xf32>
    %c0_3 = arith.constant 0 : index
    %c0_4 = arith.constant 0 : index
    %5 = vector.load %arg5[%c0_3, %c0_4] : memref<24x32xf32, #tpu.memory_space<vmem>>, vector<1x32xf32>
    tpu.vector_store %arg5[%c0_3, %c0_4], %4 {strides = array<i32>} : memref<24x32xf32, #tpu.memory_space<vmem>>, vector<1x32xf32>,
    %c1 = arith.constant 1 : index
    %6 = memref.load %arg0[%c1] : memref<16xi32, #tpu.memory_space<smem>>
    %7 = arith.index_cast %6 : i32 to index
    %c0_5 = arith.constant 0 : index
    %8 = vector.load %arg1[%7, %c0_5] : memref<50x32xf32, #tpu.memory_space<vmem>>, vector<1x32xf32>
    %c1_6 = arith.constant 1 : index
    %c0_7 = arith.constant 0 : index
    %9 = vector.load %arg5[%c1_6, %c0_7] : memref<24x32xf32, #tpu.memory_space<vmem>>, vector<1x32xf32>
    tpu.vector_store %arg5[%c1_6, %c0_7], %8 {strides = array<i32>} : memref<24x32xf32, #tpu.memory_space<vmem>>, vector<1x32xf32>,
    %c2 = arith.constant 2 : index
    %10 = memref.load %arg0[%c2] : memref<16xi32, #tpu.memory_space<smem>>
    %11 = arith.index_cast %10 : i32 to index
    %c0_8 = arith.constant 0 : index
    %12 = vector.load %arg1[%11, %c0_8] : memref<50x32xf32, #tpu.memory_space<vmem>>, vector<1x32xf32>
    %c2_9 = arith.constant 2 : index
    %c0_10 = arith.constant 0 : index
    %13 = vector.load %arg5[%c2_9, %c0_10] : memref<24x32xf32, #tpu.memory_space<vmem>>, vector<1x32xf32>
    tpu.vector_store %arg5[%c2_9, %c0_10], %12 {strides = array<i32>} : memref<24x32xf32, #tpu.memory_space<vmem>>, vector<1x32xf32>,
    %c3 = arith.constant 3 : index
    %14 = memref.load %arg0[%c3] : memref<16xi32, #tpu.memory_space<smem>>
    %15 = arith.index_cast %14 : i32 to index
    %c0_11 = arith.constant 0 : index
    %16 = vector.load %arg1[%15, %c0_11] : memref<50x32xf32, #tpu.memory_space<vmem>>, vector<1x32xf32>
    %c3_12 = arith.constant 3 : index
    %c0_13 = arith.constant 0 : index
    %17 = vector.load %arg5[%c3_12, %c0_13] : memref<24x32xf32, #tpu.memory_space<vmem>>, vector<1x32xf32>
    tpu.vector_store %arg5[%c3_12, %c0_13], %16 {strides = array<i32>} : memref<24x32xf32, #tpu.memory_space<vmem>>, vector<1x32xf32>,
    %c4 = arith.constant 4 : index
    %18 = memref.load %arg0[%c4] : memref<16xi32, #tpu.memory_space<smem>>
    %19 = arith.index_cast %18 : i32 to index
    %c0_14 = arith.constant 0 : index
    %20 = vector.load %arg1[%19, %c0_14] : memref<50x32xf32, #tpu.memory_space<vmem>>, vector<1x32xf32>
    %c4_15 = arith.constant 4 : index
    %c0_16 = arith.constant 0 : index
    %21 = vector.load %arg5[%c4_15, %c0_16] : memref<24x32xf32, #tpu.memory_space<vmem>>, vector<1x32xf32>
    tpu.vector_store %arg5[%c4_15, %c0_16], %20 {strides = array<i32>} : memref<24x32xf32, #tpu.memory_space<vmem>>, vector<1x32xf32>,
    %c5 = arith.constant 5 : index
    %22 = memref.load %arg0[%c5] : memref<16xi32, #tpu.memory_space<smem>>
    %23 = arith.index_cast %22 : i32 to index
    %c0_17 = arith.constant 0 : index
    %24 = vector.load %arg1[%23, %c0_17] : memref<50x32xf32, #tpu.memory_space<vmem>>, vector<1x32xf32>
    %c5_18 = arith.constant 5 : index
    %c0_19 = arith.constant 0 : index
    %25 = vector.load %arg5[%c5_18, %c0_19] : memref<24x32xf32, #tpu.memory_space<vmem>>, vector<1x32xf32>
    tpu.vector_store %arg5[%c5_18, %c0_19], %24 {strides = array<i32>} : memref<24x32xf32, #tpu.memory_space<vmem>>, vector<1x32xf32>,
    %c6 = arith.constant 6 : index
    %26 = memref.load %arg0[%c6] : memref<16xi32, #tpu.memory_space<smem>>
    %27 = arith.index_cast %26 : i32 to index
    %c0_20 = arith.constant 0 : index
    %28 = vector.load %arg1[%27, %c0_20] : memref<50x32xf32, #tpu.memory_space<vmem>>, vector<1x32xf32>
    %c6_21 = arith.constant 6 : index
    %c0_22 = arith.constant 0 : index
    %29 = vector.load %arg5[%c6_21, %c0_22] : memref<24x32xf32, #tpu.memory_space<vmem>>, vector<1x32xf32>
    tpu.vector_store %arg5[%c6_21, %c0_22], %28 {strides = array<i32>} : memref<24x32xf32, #tpu.memory_space<vmem>>, vector<1x32xf32>,
    %c7 = arith.constant 7 : index
    %30 = memref.load %arg0[%c7] : memref<16xi32, #tpu.memory_space<smem>>
    %31 = arith.index_cast %30 : i32 to index
    %c0_23 = arith.constant 0 : index
    %32 = vector.load %arg1[%31, %c0_23] : memref<50x32xf32, #tpu.memory_space<vmem>>, vector<1x32xf32>
    %c7_24 = arith.constant 7 : index
    %c0_25 = arith.constant 0 : index
    %33 = vector.load %arg5[%c7_24, %c0_25] : memref<24x32xf32, #tpu.memory_space<vmem>>, vector<1x32xf32>
    tpu.vector_store %arg5[%c7_24, %c0_25], %32 {strides = array<i32>} : memref<24x32xf32, #tpu.memory_space<vmem>>, vector<1x32xf32>,
    %c8 = arith.constant 8 : index
    %34 = memref.load %arg0[%c8] : memref<16xi32, #tpu.memory_space<smem>>
    %35 = arith.index_cast %34 : i32 to index
    %c0_26 = arith.constant 0 : index
    %36 = vector.load %arg1[%35, %c0_26] : memref<50x32xf32, #tpu.memory_space<vmem>>, vector<1x32xf32>
    %c8_27 = arith.constant 8 : index
    %c0_28 = arith.constant 0 : index
    %37 = vector.load %arg5[%c8_27, %c0_28] : memref<24x32xf32, #tpu.memory_space<vmem>>, vector<1x32xf32>
    tpu.vector_store %arg5[%c8_27, %c0_28], %36 {strides = array<i32>} : memref<24x32xf32, #tpu.memory_space<vmem>>, vector<1x32xf32>,
    %c9 = arith.constant 9 : index
    %38 = memref.load %arg0[%c9] : memref<16xi32, #tpu.memory_space<smem>>
    %39 = arith.index_cast %38 : i32 to index
    %c0_29 = arith.constant 0 : index
    %40 = vector.load %arg1[%39, %c0_29] : memref<50x32xf32, #tpu.memory_space<vmem>>, vector<1x32xf32>
    %c9_30 = arith.constant 9 : index
    %c0_31 = arith.constant 0 : index
    %41 = vector.load %arg5[%c9_30, %c0_31] : memref<24x32xf32, #tpu.memory_space<vmem>>, vector<1x32xf32>
    tpu.vector_store %arg5[%c9_30, %c0_31], %40 {strides = array<i32>} : memref<24x32xf32, #tpu.memory_space<vmem>>, vector<1x32xf32>,
    %c10 = arith.constant 10 : index
    %42 = memref.load %arg0[%c10] : memref<16xi32, #tpu.memory_space<smem>>
    %43 = arith.index_cast %42 : i32 to index
    %c0_32 = arith.constant 0 : index
    %44 = vector.load %arg1[%43, %c0_32] : memref<50x32xf32, #tpu.memory_space<vmem>>, vector<1x32xf32>
    %c10_33 = arith.constant 10 : index
    %c0_34 = arith.constant 0 : index
    %45 = vector.load %arg5[%c10_33, %c0_34] : memref<24x32xf32, #tpu.memory_space<vmem>>, vector<1x32xf32>
    tpu.vector_store %arg5[%c10_33, %c0_34], %44 {strides = array<i32>} : memref<24x32xf32, #tpu.memory_space<vmem>>, vector<1x32xf32>,
    %c11 = arith.constant 11 : index
    %46 = memref.load %arg0[%c11] : memref<16xi32, #tpu.memory_space<smem>>
    %47 = arith.index_cast %46 : i32 to index
    %c0_35 = arith.constant 0 : index
    %48 = vector.load %arg1[%47, %c0_35] : memref<50x32xf32, #tpu.memory_space<vmem>>, vector<1x32xf32>
    %c11_36 = arith.constant 11 : index
    %c0_37 = arith.constant 0 : index
    %49 = vector.load %arg5[%c11_36, %c0_37] : memref<24x32xf32, #tpu.memory_space<vmem>>, vector<1x32xf32>
    tpu.vector_store %arg5[%c11_36, %c0_37], %48 {strides = array<i32>} : memref<24x32xf32, #tpu.memory_space<vmem>>, vector<1x32xf32>,
    %c12 = arith.constant 12 : index
    %50 = memref.load %arg0[%c12] : memref<16xi32, #tpu.memory_space<smem>>
    %51 = arith.index_cast %50 : i32 to index
    %c0_38 = arith.constant 0 : index
    %52 = vector.load %arg1[%51, %c0_38] : memref<50x32xf32, #tpu.memory_space<vmem>>, vector<1x32xf32>
    %c12_39 = arith.constant 12 : index
    %c0_40 = arith.constant 0 : index
    %53 = vector.load %arg5[%c12_39, %c0_40] : memref<24x32xf32, #tpu.memory_space<vmem>>, vector<1x32xf32>
    tpu.vector_store %arg5[%c12_39, %c0_40], %52 {strides = array<i32>} : memref<24x32xf32, #tpu.memory_space<vmem>>, vector<1x32xf32>,
    %c13 = arith.constant 13 : index
    %54 = memref.load %arg0[%c13] : memref<16xi32, #tpu.memory_space<smem>>
    %55 = arith.index_cast %54 : i32 to index
    %c0_41 = arith.constant 0 : index
    %56 = vector.load %arg1[%55, %c0_41] : memref<50x32xf32, #tpu.memory_space<vmem>>, vector<1x32xf32>
    %c13_42 = arith.constant 13 : index
    %c0_43 = arith.constant 0 : index
    %57 = vector.load %arg5[%c13_42, %c0_43] : memref<24x32xf32, #tpu.memory_space<vmem>>, vector<1x32xf32>
    tpu.vector_store %arg5[%c13_42, %c0_43], %56 {strides = array<i32>} : memref<24x32xf32, #tpu.memory_space<vmem>>, vector<1x32xf32>,
    %c14 = arith.constant 14 : index
    %58 = memref.load %arg0[%c14] : memref<16xi32, #tpu.memory_space<smem>>
    %59 = arith.index_cast %58 : i32 to index
    %c0_44 = arith.constant 0 : index
    %60 = vector.load %arg1[%59, %c0_44] : memref<50x32xf32, #tpu.memory_space<vmem>>, vector<1x32xf32>
    %c14_45 = arith.constant 14 : index
    %c0_46 = arith.constant 0 : index
    %61 = vector.load %arg5[%c14_45, %c0_46] : memref<24x32xf32, #tpu.memory_space<vmem>>, vector<1x32xf32>
    tpu.vector_store %arg5[%c14_45, %c0_46], %60 {strides = array<i32>} : memref<24x32xf32, #tpu.memory_space<vmem>>, vector<1x32xf32>,
    %c15 = arith.constant 15 : index
    %62 = memref.load %arg0[%c15] : memref<16xi32, #tpu.memory_space<smem>>
    %63 = arith.index_cast %62 : i32 to index
    %c0_47 = arith.constant 0 : index
    %64 = vector.load %arg1[%63, %c0_47] : memref<50x32xf32, #tpu.memory_space<vmem>>, vector<1x32xf32>
    %c15_48 = arith.constant 15 : index
    %c0_49 = arith.constant 0 : index
    %65 = vector.load %arg5[%c15_48, %c0_49] : memref<24x32xf32, #tpu.memory_space<vmem>>, vector<1x32xf32>
    tpu.vector_store %arg5[%c15_48, %c0_49], %64 {strides = array<i32>} : memref<24x32xf32, #tpu.memory_space<vmem>>, vector<1x32xf32>,
    %cst_50 = arith.constant 0.000000e+00 : f32
    %66 = vector.broadcast %cst_50 : f32 to vector<16x128xf32>
    %c0_51 = arith.constant 0 : index
    %c0_52 = arith.constant 0 : index
    %67 = vector.load %arg5[%c0_51, %c0_52] : memref<24x32xf32, #tpu.memory_space<vmem>>, vector<16x32xf32>
    %c0_53 = arith.constant 0 : index
    %c0_54 = arith.constant 0 : index
    %68 = vector.load %arg2[%c0_53, %c0_54] : memref<384x128xf32, #tpu.memory_space<vmem>>, vector<32x128xf32>
    %cst_55 = arith.constant dense<0.000000e+00> : vector<16x128xf32>
    %69 = tpu.matmul %67, %68, %cst_55 {dimension_numbers = #tpu.dot_dimension_numbers<[1], [0], [0], [1], [0, 0, 1, 1], [], []>} : vector<16x32xf32>, vector<32x128xf32>, vector<16x128xf32> -> vector<16x128xf32>
    %70 = arith.addf %66, %69 : vector<16x128xf32>
    %c1_56 = arith.constant 1 : index
    %c0_57 = arith.constant 0 : index
    %71 = vector.load %arg5[%c1_56, %c0_57] : memref<24x32xf32, #tpu.memory_space<vmem>>, vector<16x32xf32>
    %c32 = arith.constant 32 : index
    %c0_58 = arith.constant 0 : index
    %72 = vector.load %arg2[%c32, %c0_58] : memref<384x128xf32, #tpu.memory_space<vmem>>, vector<32x128xf32>
    %cst_59 = arith.constant dense<0.000000e+00> : vector<16x128xf32>
    %73 = tpu.matmul %71, %72, %cst_59 {dimension_numbers = #tpu.dot_dimension_numbers<[1], [0], [0], [1], [0, 0, 1, 1], [], []>} : vector<16x32xf32>, vector<32x128xf32>, vector<16x128xf32> -> vector<16x128xf32>
    %74 = arith.addf %70, %73 : vector<16x128xf32>
    %c2_60 = arith.constant 2 : index
    %c0_61 = arith.constant 0 : index
    %75 = vector.load %arg5[%c2_60, %c0_61] : memref<24x32xf32, #tpu.memory_space<vmem>>, vector<16x32xf32>
    %c64 = arith.constant 64 : index
    %c0_62 = arith.constant 0 : index
    %76 = vector.load %arg2[%c64, %c0_62] : memref<384x128xf32, #tpu.memory_space<vmem>>, vector<32x128xf32>
    %cst_63 = arith.constant dense<0.000000e+00> : vector<16x128xf32>
    %77 = tpu.matmul %75, %76, %cst_63 {dimension_numbers = #tpu.dot_dimension_numbers<[1], [0], [0], [1], [0, 0, 1, 1], [], []>} : vector<16x32xf32>, vector<32x128xf32>, vector<16x128xf32> -> vector<16x128xf32>
    %78 = arith.addf %74, %77 : vector<16x128xf32>
    %c3_64 = arith.constant 3 : index
    %c0_65 = arith.constant 0 : index
    %79 = vector.load %arg5[%c3_64, %c0_65] : memref<24x32xf32, #tpu.memory_space<vmem>>, vector<16x32xf32>
    %c96 = arith.constant 96 : index
    %c0_66 = arith.constant 0 : index
    %80 = vector.load %arg2[%c96, %c0_66] : memref<384x128xf32, #tpu.memory_space<vmem>>, vector<32x128xf32>
    %cst_67 = arith.constant dense<0.000000e+00> : vector<16x128xf32>
    %81 = tpu.matmul %79, %80, %cst_67 {dimension_numbers = #tpu.dot_dimension_numbers<[1], [0], [0], [1], [0, 0, 1, 1], [], []>} : vector<16x32xf32>, vector<32x128xf32>, vector<16x128xf32> -> vector<16x128xf32>
    %82 = arith.addf %78, %81 : vector<16x128xf32>
    %c0_68 = arith.constant 0 : index
    %c0_69 = arith.constant 0 : index
    %83 = vector.load %arg3[%c0_68, %c0_69] : memref<3x128xf32, #tpu.memory_space<vmem>>, vector<1x128xf32>
    %84 = vector.broadcast %83 : vector<1x128xf32> to vector<16x128xf32>
    %85 = arith.addf %82, %84 : vector<16x128xf32>
    %cst_70 = arith.constant 0.000000e+00 : f32
    %86 = vector.broadcast %cst_70 : f32 to vector<16x128xf32>
    %87 = arith.maximumf %85, %86 : vector<16x128xf32>
    %88 = tpu.iota {dimensions = array<i32: 0>} : vector<16x128xi32>
    %89 = tpu.iota {dimensions = array<i32: 1>} : vector<16x128xi32>
    %c0_i32 = arith.constant 0 : i32
    %90 = vector.broadcast %c0_i32 : i32 to vector<16x128xi32>
    %c0_i32_71 = arith.constant 0 : i32
    %91 = vector.broadcast %c0_i32_71 : i32 to vector<16x128xi32>
    %92 = arith.cmpi sge, %89, %91 : vector<16x128xi32>
    %c5_i32 = arith.constant 5 : i32
    %93 = vector.broadcast %c5_i32 : i32 to vector<16x128xi32>
    %94 = arith.cmpi slt, %89, %93 : vector<16x128xi32>
    %95 = arith.andi %92, %94 : vector<16x128xi1>
    %c15_i32 = arith.constant 15 : i32
    %96 = vector.broadcast %c15_i32 : i32 to vector<16x128xi32>
    %97 = arith.select %95, %96, %90 : vector<16x128xi1>, vector<16x128xi32>
    %c5_i32_72 = arith.constant 5 : i32
    %98 = vector.broadcast %c5_i32_72 : i32 to vector<16x128xi32>
    %99 = arith.cmpi sge, %89, %98 : vector<16x128xi32>
    %c10_i32 = arith.constant 10 : i32
    %100 = vector.broadcast %c10_i32 : i32 to vector<16x128xi32>
    %101 = arith.cmpi slt, %89, %100 : vector<16x128xi32>
    %102 = arith.andi %99, %101 : vector<16x128xi1>
    %c14_i32 = arith.constant 14 : i32
    %103 = vector.broadcast %c14_i32 : i32 to vector<16x128xi32>
    %104 = arith.select %102, %103, %97 : vector<16x128xi1>, vector<16x128xi32>
    %c10_i32_73 = arith.constant 10 : i32
    %105 = vector.broadcast %c10_i32_73 : i32 to vector<16x128xi32>
    %106 = arith.cmpi sge, %89, %105 : vector<16x128xi32>
    %c15_i32_74 = arith.constant 15 : i32
    %107 = vector.broadcast %c15_i32_74 : i32 to vector<16x128xi32>
    %108 = arith.cmpi slt, %89, %107 : vector<16x128xi32>
    %109 = arith.andi %106, %108 : vector<16x128xi1>
    %c13_i32 = arith.constant 13 : i32
    %110 = vector.broadcast %c13_i32 : i32 to vector<16x128xi32>
    %111 = arith.select %109, %110, %104 : vector<16x128xi1>, vector<16x128xi32>
    %112 = arith.cmpi slt, %88, %111 : vector<16x128xi32>
    %cst_75 = arith.constant 0.000000e+00 : f32
    %113 = vector.broadcast %cst_75 : f32 to vector<16x128xf32>
    %114 = arith.select %112, %87, %113 : vector<16x128xi1>, vector<16x128xf32>
    %cst_76 = arith.constant dense<0xFF800000> : vector<128xf32>
    %115 = vector.multi_reduction <maximumf>, %114, %cst_76 [0] : vector<16x128xf32> to vector<128xf32>
    %116 = vector.shape_cast %115 : vector<128xf32> to vector<1x128xf32>
    %c128 = arith.constant 128 : index
    %c0_77 = arith.constant 0 : index
    %117 = vector.load %arg2[%c128, %c0_77] : memref<384x128xf32, #tpu.memory_space<vmem>>, vector<128x128xf32>
    %c256 = arith.constant 256 : index
    %c0_78 = arith.constant 0 : index
    %118 = vector.load %arg2[%c256, %c0_78] : memref<384x128xf32, #tpu.memory_space<vmem>>, vector<128x128xf32>
    %cst_79 = arith.constant dense<0.000000e+00> : vector<1x128xf32>
    %119 = tpu.matmul %116, %117, %cst_79 {dimension_numbers = #tpu.dot_dimension_numbers<[1], [0], [0], [1], [0, 0, 1, 1], [], []>} : vector<1x128xf32>, vector<128x128xf32>, vector<1x128xf32> -> vector<1x128xf32>
    %c1_80 = arith.constant 1 : index
    %c0_81 = arith.constant 0 : index
    %120 = vector.load %arg3[%c1_80, %c0_81] : memref<3x128xf32, #tpu.memory_space<vmem>>, vector<1x128xf32>
    %121 = arith.addf %119, %120 : vector<1x128xf32>
    %cst_82 = arith.constant dense<0.000000e+00> : vector<1x128xf32>
    %122 = tpu.matmul %121, %118, %cst_82 {dimension_numbers = #tpu.dot_dimension_numbers<[1], [0], [0], [1], [0, 0, 1, 1], [], []>} : vector<1x128xf32>, vector<128x128xf32>, vector<1x128xf32> -> vector<1x128xf32>
    %c2_83 = arith.constant 2 : index
    %c0_84 = arith.constant 0 : index
    %123 = vector.load %arg3[%c2_83, %c0_84] : memref<3x128xf32, #tpu.memory_space<vmem>>, vector<1x128xf32>
    %124 = arith.addf %122, %123 : vector<1x128xf32>
    %cst_85 = arith.constant dense<0xFF800000> : vector<1xf32>
    %125 = vector.multi_reduction <maximumf>, %124, %cst_85 [1] : vector<1x128xf32> to vector<1xf32>
    %126 = vector.shape_cast %125 : vector<1xf32> to vector<1x1xf32>
    %127 = vector.broadcast %126 : vector<1x1xf32> to vector<1x128xf32>
    %128 = arith.subf %124, %127 : vector<1x128xf32>
    %129 = math.exp %128 : vector<1x128xf32>
    %cst_86 = arith.constant dense<0.000000e+00> : vector<1xf32>
    %130 = vector.multi_reduction <add>, %129, %cst_86 [1] : vector<1x128xf32> to vector<1xf32>
    %131 = vector.shape_cast %130 : vector<1xf32> to vector<1x1xf32>
    %132 = math.log %131 : vector<1x1xf32>
    %133 = vector.broadcast %132 : vector<1x1xf32> to vector<1x128xf32>
    %134 = arith.subf %128, %133 : vector<1x128xf32>
    %c0_87 = arith.constant 0 : index
    %c0_88 = arith.constant 0 : index
    %135 = vector.load %arg4[%c0_87, %c0_88] : memref<1x128xf32, #tpu.memory_space<vmem>>, vector<1x128xf32>
    tpu.vector_store %arg4[%c0_87, %c0_88], %134 {strides = array<i32>} : memref<1x128xf32, #tpu.memory_space<vmem>>, vector<1x128xf32>,
    return
  }
}

</mosaic_0001>

<llo_original>
// kernel: tpu_custom_call.1
$region0: #{tpu_custom_call.1}
  #allocation0 [shape = 'u32[]', space=smem, size = 0x4, offset = 0x4, fixed_abs, tag = 'smem constant byte address 0x4 - core index']
  #allocation1 [shape = 'u32[72,128]{1,0:T(1,128)}', space=vmem, size = 0x9000, scoped, tag = 'internal scratch']
  #allocation2 [shape = 'f32[24,32]{1,0:T(8,128)}', space=vmem, size = 0x3000, scoped, tag = 'scratch operand']
  %s0 = inlined_call_operand.vmem [shape: s32[16], index: 0, kind: input, shape index: {}]
  %s1 = inlined_call_operand.vmem [shape: f32[50,32], index: 1, kind: input, shape index: {}]
  %s2 = inlined_call_operand.hbm [shape: f32[384,128], index: 2, kind: input, shape index: {}]
  %s3 = inlined_call_operand.vmem [shape: f32[3,128], index: 3, kind: input, shape index: {}]
  %s4 = inlined_call_operand.hbm [shape: f32[1,128], index: 4, kind: output, shape index: {}]
  %s5 = sld [smem:[#allocation0]]
  $region34: #{tpu_custom_call.1} parent=0
    _
  %s7 = ssub.s32 1, %s5
  %s8 = scalar_select 0, %s7, %s5
  $region1: #{tpu_custom_call.1} parent=0
    #allocation3 [shape = 'u8[512]{0}', space=smem, size = 0x200, scoped, tag = 'input window, operand 0, single buffered']
    #allocation4 [shape = 's32[1]{0}', space=sflag, size = 0x4, scoped, tag = 'scoped memory for tpu_custom_call.1']
    #allocation5 [shape = 's32[1]{0}', space=sflag, size = 0x4, scoped, tag = 'scoped memory for tpu_custom_call.1']
    #allocation6 [shape = 's32[1]{0}', space=sflag, size = 0x4, scoped, tag = 'scoped memory for tpu_custom_call.1']
    #allocation7 [shape = 'u8[196608]{0}', space=vmem, size = 0x30000, scoped, tag = 'input window, operand 2, single buffered']
    #allocation8 [shape = 'u8[512]{0}', space=vmem, size = 0x400, scoped, tag = 'output window, operand 0, single buffered']
    %9 = vsyncpa [#allocation6], 0
    %10 = vsyncpa [#allocation4], 0
    %11 = vsyncpa [#allocation5], 0
    // Predicated region
    $region2: #{tpu_custom_call.1} parent=1 // pred_check
      _
    $region3: #{tpu_custom_call.1} parent=1 // pred_check_branch
      %13 = sbr.rel (0) target = $region5
    $region4: #{tpu_custom_call.1} parent=1 // pred_region
      %15 = vsyncadd [#allocation6], 0
      %s17 = sshll.u32 %s0, 4
      %s18 = int_to_ptr.vmem [resolvable:$true] %s17
      %20 = dma.vmem_to_smem %s18, 16, [#allocation3], [#allocation6]
    $region5: #{tpu_custom_call.1} parent=1 // pred_fallthru
      _
    // Predicated region
    $region6: #{tpu_custom_call.1} parent=1 // pred_check
      _
    $region7: #{tpu_custom_call.1} parent=1 // pred_check_branch
      %22 = sbr.rel (0) target = $region9
    $region8: #{tpu_custom_call.1} parent=1 // pred_region
      _
    $region9: #{tpu_custom_call.1} parent=1 // pred_fallthru
      _
    // Predicated region
    $region10: #{tpu_custom_call.1} parent=1 // pred_check
      _
    $region11: #{tpu_custom_call.1} parent=1 // pred_check_branch
      %24 = sbr.rel (0) target = $region13
    $region12: #{tpu_custom_call.1} parent=1 // pred_region
      %26 = vsyncadd [#allocation4], 0
      %s27 = sshll.u32 %s2, 4
      %s28 = int_to_ptr.hbm [resolvable:$true] %s27
      %s29 = sshll.u32 [#allocation7], 4
      %s30 = int_to_ptr.vmem [resolvable:$true] %s29
      %35 = dma.hbm_to_vmem [thread:$0]  %s28, 6144, %s30, [#allocation4], 128, 128, 8
    $region13: #{tpu_custom_call.1} parent=1 // pred_fallthru
      _
    // Predicated region
    $region14: #{tpu_custom_call.1} parent=1 // pred_check
      _
    $region15: #{tpu_custom_call.1} parent=1 // pred_check_branch
      %37 = sbr.rel (0) target = $region17
    $region16: #{tpu_custom_call.1} parent=1 // pred_region
      _
    $region17: #{tpu_custom_call.1} parent=1 // pred_fallthru
      _
    // Predicated region
    $region18: #{tpu_custom_call.1} parent=1 // pred_check
      _
    $region19: #{tpu_custom_call.1} parent=1 // pred_check_branch
      %39 = sbr.rel (0) target = $region21
    $region20: #{tpu_custom_call.1} parent=1 // pred_region
      %41 = dma.done [#allocation6], 16
    $region21: #{tpu_custom_call.1} parent=1 // pred_fallthru
      _
    // Predicated region
    $region22: #{tpu_custom_call.1} parent=1 // pred_check
      _
    $region23: #{tpu_custom_call.1} parent=1 // pred_check_branch
      %43 = sbr.rel (0) target = $region25
    $region24: #{tpu_custom_call.1} parent=1 // pred_region
      %45 = dma.done [#allocation4], 6144
    $region25: #{tpu_custom_call.1} parent=1 // pred_fallthru
      _
    %46 = sfence
    %vm47 = vcmask 261120
    %48 = vst.msk [vmem:[#allocation2] sm:$0xff] %vm47, 0.0
    %49 = vst.msk [vmem:[#allocation2 + $0x8] sm:$0xff] %vm47, 0.0
    %50 = vst.msk [vmem:[#allocation2 + $0x10] sm:$0xff] %vm47, 0.0
    %s51 = sld [smem:[#allocation3]]
    %s52 = scalar_lea.vmem %s1, %s51
    %v53 = vld [vmem:[%s52] sm:$0x1]
    %vm54 = vcmask 253952
    %55 = vst.msk [vmem:[#allocation2] sm:$0x1] %vm54, %v53
    %s56 = sld [smem:[#allocation3 + $0x1]]
    %s57 = scalar_lea.vmem %s1, %s56
    %v58 = vld [vmem:[%s57] sm:$0x1]
    %59 = vst.msk [vmem:[#allocation2 + $0x1] sm:$0x1] %vm54, %v58
    %s60 = sld [smem:[#allocation3 + $0x2]]
    %s61 = scalar_lea.vmem %s1, %s60
    %v62 = vld [vmem:[%s61] sm:$0x1]
    %63 = vst.msk [vmem:[#allocation2 + $0x2] sm:$0x1] %vm54, %v62
    %s64 = sld [smem:[#allocation3 + $0x3]]
    %s65 = scalar_lea.vmem %s1, %s64
    %v66 = vld [vmem:[%s65] sm:$0x1]
    %67 = vst.msk [vmem:[#allocation2 + $0x3] sm:$0x1] %vm54, %v66
    %s68 = sld [smem:[#allocation3 + $0x4]]
    %s69 = scalar_lea.vmem %s1, %s68
    %v70 = vld [vmem:[%s69] sm:$0x1]
    %71 = vst.msk [vmem:[#allocation2 + $0x4] sm:$0x1] %vm54, %v70
    %s72 = sld [smem:[#allocation3 + $0x5]]
    %s73 = scalar_lea.vmem %s1, %s72
    %v74 = vld [vmem:[%s73] sm:$0x1]
    %75 = vst.msk [vmem:[#allocation2 + $0x5] sm:$0x1] %vm54, %v74
    %s76 = sld [smem:[#allocation3 + $0x6]]
    %s77 = scalar_lea.vmem %s1, %s76
    %v78 = vld [vmem:[%s77] sm:$0x1]
    %79 = vst.msk [vmem:[#allocation2 + $0x6] sm:$0x1] %vm54, %v78
    %s80 = sld [smem:[#allocation3 + $0x7]]
    %s81 = scalar_lea.vmem %s1, %s80
    %v82 = vld [vmem:[%s81] sm:$0x1]
    %83 = vst.msk [vmem:[#allocation2 + $0x7] sm:$0x1] %vm54, %v82
    %s84 = sld [smem:[#allocation3 + $0x8]]
    %s85 = scalar_lea.vmem %s1, %s84
    %v86 = vld [vmem:[%s85] sm:$0x1]
    %87 = vst.msk [vmem:[#allocation2 + $0x8] sm:$0x1] %vm54, %v86
    %s88 = sld [smem:[#allocation3 + $0x9]]
    %s89 = scalar_lea.vmem %s1, %s88
    %v90 = vld [vmem:[%s89] sm:$0x1]
    %91 = vst.msk [vmem:[#allocation2 + $0x9] sm:$0x1] %vm54, %v90
    %s92 = sld [smem:[#allocation3 + $0xa]]
    %s93 = scalar_lea.vmem %s1, %s92
    %v94 = vld [vmem:[%s93] sm:$0x1]
    %95 = vst.msk [vmem:[#allocation2 + $0xa] sm:$0x1] %vm54, %v94
    %s96 = sld [smem:[#allocation3 + $0xb]]
    %s97 = scalar_lea.vmem %s1, %s96
    %v98 = vld [vmem:[%s97] sm:$0x1]
    %99 = vst.msk [vmem:[#allocation2 + $0xb] sm:$0x1] %vm54, %v98
    %s100 = sld [smem:[#allocation3 + $0xc]]
    %s101 = scalar_lea.vmem %s1, %s100
    %v102 = vld [vmem:[%s101] sm:$0x1]
    %103 = vst.msk [vmem:[#allocation2 + $0xc] sm:$0x1] %vm54, %v102
    %s104 = sld [smem:[#allocation3 + $0xd]]
    %s105 = scalar_lea.vmem %s1, %s104
    %v106 = vld [vmem:[%s105] sm:$0x1]
    %107 = vst.msk [vmem:[#allocation2 + $0xd] sm:$0x1] %vm54, %v106
    %s108 = sld [smem:[#allocation3 + $0xe]]
    %s109 = scalar_lea.vmem %s1, %s108
    %v110 = vld [vmem:[%s109] sm:$0x1]
    %111 = vst.msk [vmem:[#allocation2 + $0xe] sm:$0x1] %vm54, %v110
    %s112 = sld [smem:[#allocation3 + $0xf]]
    %s113 = scalar_lea.vmem %s1, %s112
    %v114 = vld [vmem:[%s113] sm:$0x1]
    %115 = vst.msk [vmem:[#allocation2 + $0xf] sm:$0x1] %vm54, %v114
    %v116 = vld [vmem:[#allocation2] sm:$0xff]
    %v117 = vld [vmem:[#allocation2 + $0x8] sm:$0xff]
    %v118 = vld [vmem:[#allocation7] sm:$0xff]
    %v119 = vld [vmem:[#allocation7 + $0x8] sm:$0xff]
    %v120 = vld [vmem:[#allocation7 + $0x10] sm:$0xff]
    %v121 = vld [vmem:[#allocation7 + $0x18] sm:$0xff]
    %v122 = vld [vmem:[#allocation2 + $0x1] sm:$0xff]
    %v123 = vld [vmem:[#allocation2 + $0x9] sm:$0xff]
    %v124 = vld [vmem:[#allocation7 + $0x20] sm:$0xff]
    %v125 = vld [vmem:[#allocation7 + $0x28] sm:$0xff]
    %v126 = vld [vmem:[#allocation7 + $0x30] sm:$0xff]
    %v127 = vld [vmem:[#allocation7 + $0x38] sm:$0xff]
    %v129 = vsel %vm47, %v122, 0
    %v132 = vsel %vm47, %v123, 0
    %134 = vmatpush.msra.mxu0 0.0
    %135 = vmatpush.msra.mxu0 0.0
    %136 = vmatpush.msra.mxu0 0.0
    %137 = vmatpush.msra.mxu0 0.0
    %138 = vmatpush.msra.mxu0 0.0
    %139 = vmatpush.msra.mxu0 0.0
    %140 = vmatpush.msra.mxu0 0.0
    %141 = vmatpush.msra.mxu0 0.0
    %142 = vmatpush.msra.mxu0 0.0
    %143 = vmatpush.msra.mxu0 0.0
    %144 = vmatpush.msra.mxu0 0.0
    %145 = vmatpush.msra.mxu0 0.0
    %146 = vmatpush.msra.mxu0 %v127
    %147 = vmatpush.msra.mxu0 %v126
    %148 = vmatpush.msra.mxu0 %v125
    %149 = vmatpush.msra.mxu0 %v124
    %150 = vmatmul.f32.gmra.mxu0 %v129
    %v151 = vpop.f32.mrf.mxu0
    %v152 = vadd.f32 0.0, %v151
    %153 = vmatmul.f32.gmra.mxu0 %v132
    %v154 = vpop.f32.mrf.mxu0
    %v155 = vadd.f32 0.0, %v154
    %156 = vdwg.mxu0
    %v158 = vsel %vm47, %v116, 0
    %v161 = vsel %vm47, %v117, 0
    %163 = vmatpush.msra.mxu0 0.0
    %164 = vmatpush.msra.mxu0 0.0
    %165 = vmatpush.msra.mxu0 0.0
    %166 = vmatpush.msra.mxu0 0.0
    %167 = vmatpush.msra.mxu0 0.0
    %168 = vmatpush.msra.mxu0 0.0
    %169 = vmatpush.msra.mxu0 0.0
    %170 = vmatpush.msra.mxu0 0.0
    %171 = vmatpush.msra.mxu0 0.0
    %172 = vmatpush.msra.mxu0 0.0
    %173 = vmatpush.msra.mxu0 0.0
    %174 = vmatpush.msra.mxu0 0.0
    %175 = vmatpush.msra.mxu0 %v121
    %176 = vmatpush.msra.mxu0 %v120
    %177 = vmatpush.msra.mxu0 %v119
    %178 = vmatpush.msra.mxu0 %v118
    %179 = vmatmul.f32.gmra.mxu0 %v158
    %v180 = vpop.f32.mrf.mxu0
    %v181 = vadd.f32 %v152, %v180
    %182 = vmatmul.f32.gmra.mxu0 %v161
    %v183 = vpop.f32.mrf.mxu0
    %v184 = vadd.f32 %v155, %v183
    %185 = vdwg.mxu0
    %v186 = vld [vmem:[#allocation2 + $0x2] sm:$0xff]
    %v187 = vld [vmem:[#allocation2 + $0xa] sm:$0xff]
    %v188 = vld [vmem:[#allocation7 + $0x40] sm:$0xff]
    %v189 = vld [vmem:[#allocation7 + $0x48] sm:$0xff]
    %v190 = vld [vmem:[#allocation7 + $0x50] sm:$0xff]
    %v191 = vld [vmem:[#allocation7 + $0x58] sm:$0xff]
    %v193 = vsel %vm47, %v186, 0
    %v196 = vsel %vm47, %v187, 0
    %198 = vmatpush.msra.mxu0 0.0
    %199 = vmatpush.msra.mxu0 0.0
    %200 = vmatpush.msra.mxu0 0.0
    %201 = vmatpush.msra.mxu0 0.0
    %202 = vmatpush.msra.mxu0 0.0
    %203 = vmatpush.msra.mxu0 0.0
    %204 = vmatpush.msra.mxu0 0.0
    %205 = vmatpush.msra.mxu0 0.0
    %206 = vmatpush.msra.mxu0 0.0
    %207 = vmatpush.msra.mxu0 0.0
    %208 = vmatpush.msra.mxu0 0.0
    %209 = vmatpush.msra.mxu0 0.0
    %210 = vmatpush.msra.mxu0 %v191
    %211 = vmatpush.msra.mxu0 %v190
    %212 = vmatpush.msra.mxu0 %v189
    %213 = vmatpush.msra.mxu0 %v188
    %214 = vmatmul.f32.gmra.mxu0 %v193
    %v215 = vpop.f32.mrf.mxu0
    %v216 = vadd.f32 0.0, %v215
    %217 = vmatmul.f32.gmra.mxu0 %v196
    %v218 = vpop.f32.mrf.mxu0
    %v219 = vadd.f32 0.0, %v218
    %220 = vdwg.mxu0
    %v221 = vadd.f32 %v181, %v216
    %v222 = vadd.f32 %v184, %v219
    %v223 = vld [vmem:[#allocation2 + $0x3] sm:$0xff]
    %v224 = vld [vmem:[#allocation2 + $0xb] sm:$0xff]
    %v225 = vld [vmem:[#allocation7 + $0x60] sm:$0xff]
    %v226 = vld [vmem:[#allocation7 + $0x68] sm:$0xff]
    %v227 = vld [vmem:[#allocation7 + $0x70] sm:$0xff]
    %v228 = vld [vmem:[#allocation7 + $0x78] sm:$0xff]
    %v230 = vsel %vm47, %v223, 0
    %v233 = vsel %vm47, %v224, 0
    %235 = vmatpush.msra.mxu0 0.0
    %236 = vmatpush.msra.mxu0 0.0
    %237 = vmatpush.msra.mxu0 0.0
    %238 = vmatpush.msra.mxu0 0.0
    %239 = vmatpush.msra.mxu0 0.0
    %240 = vmatpush.msra.mxu0 0.0
    %241 = vmatpush.msra.mxu0 0.0
    %242 = vmatpush.msra.mxu0 0.0
    %243 = vmatpush.msra.mxu0 0.0
    %244 = vmatpush.msra.mxu0 0.0
    %245 = vmatpush.msra.mxu0 0.0
    %246 = vmatpush.msra.mxu0 0.0
    %247 = vmatpush.msra.mxu0 %v228
    %248 = vmatpush.msra.mxu0 %v227
    %249 = vmatpush.msra.mxu0 %v226
    %250 = vmatpush.msra.mxu0 %v225
    %251 = vmatmul.f32.gmra.mxu0 %v230
    %v252 = vpop.f32.mrf.mxu0
    %v253 = vadd.f32 0.0, %v252
    %254 = vmatmul.f32.gmra.mxu0 %v233
    %v255 = vpop.f32.mrf.mxu0
    %v256 = vadd.f32 0.0, %v255
    %257 = vdwg.mxu0
    %v258 = vadd.f32 %v221, %v253
    %v259 = vadd.f32 %v222, %v256
    %v260 = vld [vmem:[%s3] sm:$0x1]
    %v261 = vperm.slane %v260, 0
    %v262 = vadd.f32 %v258, %v261
    %v263 = vadd.f32 %v259, %v261
    %v264 = vmax.f32 %v262, 0.0
    %v265 = vmax.f32 %v263, 0.0
    %v266 = vlaneseq
    %v267 = vshrl.u32 %v266, 7
    %v268 = vadd.s32 %v267, 8
    %v269 = vlaneseq
    %v270 = vand.u32 %v269, 127
    %vm271 = vcmp.ge.s32.totalorder %v270, 0
    %vm272 = vcmp.lt.s32.totalorder %v270, 5
    %vm273 = vmand %vm271, %vm272
    %v274 = vsel %vm273, 15, 0
    %vm275 = vcmp.ge.s32.totalorder %v270, 5
    %vm276 = vcmp.lt.s32.totalorder %v270, 10
    %vm277 = vmand %vm275, %vm276
    %v278 = vsel %vm277, 14, %v274
    %vm279 = vcmp.ge.s32.totalorder %v270, 10
    %vm280 = vcmp.lt.s32.totalorder %v270, 15
    %vm281 = vmand %vm279, %vm280
    %v282 = vsel %vm281, 13, %v278
    %vm283 = vcmp.lt.s32.totalorder %v267, %v282
    %vm284 = vcmp.lt.s32.totalorder %v268, %v282
    %v285 = vsel %vm283, %v264, 0.0
    %v286 = vsel %vm284, %v265, 0.0
    %v287 = vmax.f32 %v285, %v286
    %v288 = vrot.slane %v287, 4
    %v289 = vmax.f32 %v287, %v288
    %v290 = vrot.slane %v289, 2
    %v291 = vmax.f32 %v289, %v290
    %v292 = vrot.slane %v291, 1
    %v293 = vmax.f32 %v291, %v292
    %v294 = vld [vmem:[#allocation7 + $0x80] sm:$0xff]
    %v295 = vld [vmem:[#allocation7 + $0x88] sm:$0xff]
    %v296 = vld [vmem:[#allocation7 + $0x90] sm:$0xff]
    %v297 = vld [vmem:[#allocation7 + $0x98] sm:$0xff]
    %v298 = vld [vmem:[#allocation7 + $0xa0] sm:$0xff]
    %v299 = vld [vmem:[#allocation7 + $0xa8] sm:$0xff]
    %v300 = vld [vmem:[#allocation7 + $0xb0] sm:$0xff]
    %v301 = vld [vmem:[#allocation7 + $0xb8] sm:$0xff]
    %v302 = vld [vmem:[#allocation7 + $0xc0] sm:$0xff]
    %v303 = vld [vmem:[#allocation7 + $0xc8] sm:$0xff]
    %v304 = vld [vmem:[#allocation7 + $0xd0] sm:$0xff]
    %v305 = vld [vmem:[#allocation7 + $0xd8] sm:$0xff]
    %v306 = vld [vmem:[#allocation7 + $0xe0] sm:$0xff]
    %v307 = vld [vmem:[#allocation7 + $0xe8] sm:$0xff]
    %v308 = vld [vmem:[#allocation7 + $0xf0] sm:$0xff]
    %v309 = vld [vmem:[#allocation7 + $0xf8] sm:$0xff]
    %v310 = vld [vmem:[#allocation7 + $0x100] sm:$0xff]
    %v311 = vld [vmem:[#allocation7 + $0x108] sm:$0xff]
    %v312 = vld [vmem:[#allocation7 + $0x110] sm:$0xff]
    %v313 = vld [vmem:[#allocation7 + $0x118] sm:$0xff]
    %v314 = vld [vmem:[#allocation7 + $0x120] sm:$0xff]
    %v315 = vld [vmem:[#allocation7 + $0x128] sm:$0xff]
    %v316 = vld [vmem:[#allocation7 + $0x130] sm:$0xff]
    %v317 = vld [vmem:[#allocation7 + $0x138] sm:$0xff]
    %v318 = vld [vmem:[#allocation7 + $0x140] sm:$0xff]
    %v319 = vld [vmem:[#allocation7 + $0x148] sm:$0xff]
    %v320 = vld [vmem:[#allocation7 + $0x150] sm:$0xff]
    %v321 = vld [vmem:[#allocation7 + $0x158] sm:$0xff]
    %v322 = vld [vmem:[#allocation7 + $0x160] sm:$0xff]
    %v323 = vld [vmem:[#allocation7 + $0x168] sm:$0xff]
    %v324 = vld [vmem:[#allocation7 + $0x170] sm:$0xff]
    %v325 = vld [vmem:[#allocation7 + $0x178] sm:$0xff]
    %v326 = vld [vmem:[%s3 + $0x1] sm:$0x1]
    %327 = vmatpush.msra.mxu0 %v309
    %328 = vmatpush.msra.mxu0 %v308
    %329 = vmatpush.msra.mxu0 %v307
    %330 = vmatpush.msra.mxu0 %v306
    %331 = vmatpush.msra.mxu0 %v305
    %332 = vmatpush.msra.mxu0 %v304
    %333 = vmatpush.msra.mxu0 %v303
    %334 = vmatpush.msra.mxu0 %v302
    %335 = vmatpush.msra.mxu0 %v301
    %336 = vmatpush.msra.mxu0 %v300
    %337 = vmatpush.msra.mxu0 %v299
    %338 = vmatpush.msra.mxu0 %v298
    %339 = vmatpush.msra.mxu0 %v297
    %340 = vmatpush.msra.mxu0 %v296
    %341 = vmatpush.msra.mxu0 %v295
    %342 = vmatpush.msra.mxu0 %v294
    %343 = vmatmul.f32.gmra.mxu0 %v293
    %v344 = vpop.f32.mrf.mxu0
    %v345 = vadd.f32 %v326, %v344
    %346 = vdwg.mxu0
    %v347 = vld [vmem:[%s3 + $0x2] sm:$0x1]
    %348 = vmatpush.msra.mxu0 %v325
    %349 = vmatpush.msra.mxu0 %v324
    %350 = vmatpush.msra.mxu0 %v323
    %351 = vmatpush.msra.mxu0 %v322
    %352 = vmatpush.msra.mxu0 %v321
    %353 = vmatpush.msra.mxu0 %v320
    %354 = vmatpush.msra.mxu0 %v319
    %355 = vmatpush.msra.mxu0 %v318
    %356 = vmatpush.msra.mxu0 %v317
    %357 = vmatpush.msra.mxu0 %v316
    %358 = vmatpush.msra.mxu0 %v315
    %359 = vmatpush.msra.mxu0 %v314
    %360 = vmatpush.msra.mxu0 %v313
    %361 = vmatpush.msra.mxu0 %v312
    %362 = vmatpush.msra.mxu0 %v311
    %363 = vmatpush.msra.mxu0 %v310
    %364 = vmatmul.f32.gmra.mxu0 %v345
    %v365 = vpop.f32.mrf.mxu0
    %v366 = vadd.f32 %v347, %v365
    %367 = vdwg.mxu0
    %vm368 = vcmask 1040384
    %v369 = vsel %vm368, %v366, -inf
    %370 = vmax.xlane.f32.xlu0 %v369
    %v371 = vpop.xlane.xlu0 %370
    %v372 = vsub.f32 %v366, %v371
    %v373 = vmul.f32 %v372, 1.442695
    %v374 = vpow.pop %v373
    %v375 = vsel %vm368, %v374, 0.0
    %376 = vadd.xlane.f32.xlu0 %v375
    %v377 = vpop.xlane.xlu0 %376
    %v378 = vlog2.pop %v377
    %v379 = vmul.f32 %v378, 0.6931472
    %v380 = vsub.f32 %v372, %v379
    %381 = vst [vmem:[#allocation8] sm:$0x1] %v380
    // Predicated region
    $region26: #{tpu_custom_call.1} parent=1 // pred_check
      _
    $region27: #{tpu_custom_call.1} parent=1 // pred_check_branch
      %383 = sbr.rel (0) target = $region29
    $region28: #{tpu_custom_call.1} parent=1 // pred_region
      %385 = vsyncadd [#allocation5], 0
      %s387 = sshll.u32 [#allocation8], 4
      %s388 = int_to_ptr.vmem [resolvable:$true] %s387
      %s389 = sshll.u32 %s4, 4
      %s390 = int_to_ptr.hbm [resolvable:$true] %s389
      %392 = dma.vmem_to_hbm [thread:$0]  %s388, 16, %s390, [#allocation5]
    $region29: #{tpu_custom_call.1} parent=1 // pred_fallthru
      _
    // Predicated region
    $region30: #{tpu_custom_call.1} parent=1 // pred_check
      _
    $region31: #{tpu_custom_call.1} parent=1 // pred_check_branch
      %394 = sbr.rel (0) target = $region33
    $region32: #{tpu_custom_call.1} parent=1 // pred_region
      %396 = dma.done [#allocation5], 16
    $region33: #{tpu_custom_call.1} parent=1 // pred_fallthru
      _
    %397 = vsyncpa [#allocation4], 1
    %398 = vsyncpa [#allocation5], 1
    %399 = vsyncpa [#allocation6], 1

</llo_original>
